<compile_context>
chip_gen: v5e
topology: v5e:2x2
jax: 0.10.0
libtpu: 0.0.40
codegen_flags: <defaults>
</compile_context>

<pallas_src>
import functools

import jax
import jax.numpy as jnp
from jax.experimental import pallas as pl
from jax.experimental.pallas import tpu as pltpu


def _round_up(a, b):
    return (a + b - 1) // b * b


# ---------------- Pallas kernels ----------------

def _seg_global_kernel(starts_ref, ends_ref, invc_ref, x_ref, w2t_ref, b2_ref,
                       g_ref, acc_ref):
    """Tiled per-segment sum -> (last step) mean -> linear2 -> ReLU.

    starts/ends/invc: (B_pad, 1) segment bookkeeping (O(B), no (N,B) arrays)
    x:                (tile_n, C) row tile of the padded point features
    out g:            (B_pad, C)  per-segment global feature
    acc:              (B_pad, C)  f32 VMEM accumulator (persists across grid)
    """
    i = pl.program_id(0)

    @pl.when(i == 0)
    def _init():
        acc_ref[...] = jnp.zeros_like(acc_ref)

    b_pad = acc_ref.shape[0]
    tile_n = x_ref.shape[0]
    # global row index of every column of this tile, per segment row
    gidx = i * tile_n + jax.lax.broadcasted_iota(jnp.int32, (b_pad, tile_n), 1)
    mask = ((gidx >= starts_ref[...]) & (gidx < ends_ref[...])).astype(x_ref.dtype)
    # (B_pad, tile_n) @ (tile_n, C): big-K MXU contraction, f32 accumulation
    acc_ref[...] += jnp.dot(mask, x_ref[...], preferred_element_type=jnp.float32)

    @pl.when(i == pl.num_programs(0) - 1)
    def _finalize():
        means = acc_ref[...] * invc_ref[...]                 # 1/max(cnt,1) folded in
        g = jnp.dot(means, w2t_ref[...],
                    preferred_element_type=jnp.float32) + b2_ref[...]   # linear2
        g_ref[...] = jnp.maximum(g, 0.0)                     # ReLU


def _fused_linear_bn_relu_kernel(xp_ref, wbig_ref, vbig_ref, srep_ref, erep_ref,
                                 o_ref, *, pack):
    """Lane-dense fused linear1 + (folded) BatchNorm + ReLU on packed rows.

    xp:    (tile_m, 128)  = pack(=128/C) original rows per packed row (bit-identical reshape)
    wbig:  (128, 128)     block-diagonal [W1a^T * bn_scale] (x-part of linear1)
    vbig:  (pack*B_pad, 128) block-diagonal per-segment vectors
                          v_b = (g_b @ W1b^T) * bn_scale + bn_shift
    srep/erep: (1, pack*B_pad) segment start/end row indices per (lane-group, segment)
    out:   (tile_m, 128)  lane-dense packed output rows
    """
    tile_m, _ = o_ref.shape
    kcols = srep_ref.shape[1]
    n_seg = kcols // pack
    i = pl.program_id(0)

    # x-part of linear1 (BN scale folded into the block-diagonal weight): one MXU matmul,
    # lane-dense input and output.
    h = jnp.dot(xp_ref[...], wbig_ref[...], preferred_element_type=jnp.float32)

    # In-register (tile_m, pack*B_pad) segment one-hot built from O(B) offsets
    # (replaces the old HBM-materialized (N, B) one-hot).
    m_io = jax.lax.broadcasted_iota(jnp.int32, (tile_m, kcols), 0)
    c_io = jax.lax.broadcasted_iota(jnp.int32, (tile_m, kcols), 1)
    grow = pack * (i * tile_m + m_io) + c_io // n_seg        # original row id per element
    oh = ((grow >= srep_ref[...]) & (grow < erep_ref[...])).astype(jnp.float32)

    # Per-segment global-feature contribution (+ folded linear bias / BN shift),
    # broadcast to rows via a small-K MXU matmul -> stays lane-dense.
    vsel = jnp.dot(oh, vbig_ref[...], preferred_element_type=jnp.float32)

    o_ref[...] = jnp.maximum(h + vsel, 0.0).astype(o_ref.dtype)   # f32 epilogue


# ---------------- wrapper ----------------

def transition_up(x, o, params, *, tile_n=1024, eps=1e-5,
                  compute_dtype=jnp.bfloat16):
    """x: (N, C) float32 point features, o: (B,) int32 cumulative offsets."""
    N, C = x.shape
    B = int(o.shape[0])
    assert 128 % C == 0, "lane-dense packing assumes C divides 128"
    pack = 128 // C                  # original rows per 128-lane packed row
    unit = 8 * pack                  # row granularity for (8,128)-aligned packed tiles
    tile_n = _round_up(min(tile_n, _round_up(N, unit)), unit)
    n_pad = _round_up(N, tile_n)
    b_pad = _round_up(B, 8)
    lanes = pack * C                 # 128

    # ---- O(B) segment bookkeeping (padded segments are empty: start == end == n_pad) ----
    o32 = o.astype(jnp.int32)
    starts = jnp.concatenate([jnp.zeros((1,), jnp.int32), o32[:-1]])
    ends = o32
    starts_p = jnp.full((b_pad,), n_pad, jnp.int32).at[:B].set(starts)
    ends_p = jnp.full((b_pad,), n_pad, jnp.int32).at[:B].set(ends)
    cnt = (ends_p - starts_p).astype(jnp.float32)
    inv_cnt = 1.0 / jnp.maximum(cnt, 1.0)        # guard empty segments

    # ---- fold linear1 bias + eval-mode BatchNorm into scale/shift ----
    w1, b1 = params["w1"], params["b1"]          # (C, 2C), (C,)
    w2, b2 = params["w2"], params["b2"]          # (C, C), (C,)
    gamma, beta = params["gamma"], params["beta"]
    rmean, rvar = params["rmean"], params["rvar"]
    bn_scale = gamma * jax.lax.rsqrt(rvar + eps)
    bn_shift = beta + (b1 - rmean) * bn_scale
    w1a_t = w1[:, :C].T * bn_scale[None, :]      # acts on x, BN scale folded in
    w1b_t = w1[:, C:].T                          # acts on the per-segment global feature

    # ---- inputs: pad, cast (bf16 operands on v6e/v7x), lane-dense packed view ----
    x_pad = jnp.pad(x, ((0, n_pad - N), (0, 0)))
    x_c = x_pad.astype(compute_dtype)
    xp = x_c.reshape(n_pad // pack, lanes)       # bit-identical row-major repack

    # ---- pass 1: per-segment mean -> linear2 -> ReLU (tiled, VMEM accumulator) ----
    g = pl.pallas_call(
        _seg_global_kernel,
        out_shape=jax.ShapeDtypeStruct((b_pad, C), jnp.float32),
        grid_spec=pltpu.PrefetchScalarGridSpec(
            num_scalar_prefetch=0,
            grid=(n_pad // tile_n,),
            in_specs=[
                pl.BlockSpec((b_pad, 1), lambda i: (0, 0)),     # starts
                pl.BlockSpec((b_pad, 1), lambda i: (0, 0)),     # ends
                pl.BlockSpec((b_pad, 1), lambda i: (0, 0)),     # 1/cnt
                pl.BlockSpec((tile_n, C), lambda i: (i, 0)),    # x row tile
                pl.BlockSpec((C, C), lambda i: (0, 0)),         # W2^T
                pl.BlockSpec((1, C), lambda i: (0, 0)),         # b2
            ],
            out_specs=pl.BlockSpec((b_pad, C), lambda i: (0, 0)),
            scratch_shapes=[pltpu.VMEM((b_pad, C), jnp.float32)],
        ),
        compiler_params=pltpu.CompilerParams(
            dimension_semantics=("arbitrary",),      # reduction axis (accumulator-resident)
            vmem_limit_bytes=32 * 1024 * 1024),
    )(starts_p[:, None], ends_p[:, None], inv_cnt[:, None],
      x_c, w2.T.astype(jnp.float32), b2[None, :].astype(jnp.float32))

    # tiny O(B*C) glue: per-segment W1b contribution with bias/BN folded in
    v = jnp.dot(g, w1b_t) * bn_scale[None, :] + bn_shift[None, :]        # (B_pad, C)
    eye_p = jnp.eye(pack, dtype=jnp.float32)
    vbig = jnp.kron(eye_p, v)                                            # (pack*B_pad, 128)
    wbig = jnp.kron(eye_p, w1a_t).astype(compute_dtype)                  # (128, 128)
    starts_rep = jnp.tile(starts_p, pack)[None, :]                       # (1, pack*B_pad)
    ends_rep = jnp.tile(ends_p, pack)[None, :]

    tile_m = tile_n // pack
    kcols = pack * b_pad

    # ---- pass 2: fused linear1 + BN + ReLU, lane-dense packed rows ----
    out_p = pl.pallas_call(
        functools.partial(_fused_linear_bn_relu_kernel, pack=pack),
        out_shape=jax.ShapeDtypeStruct((n_pad // pack, lanes), x.dtype),
        grid_spec=pltpu.PrefetchScalarGridSpec(
            num_scalar_prefetch=0,
            grid=(n_pad // tile_n,),
            in_specs=[
                pl.BlockSpec((tile_m, lanes), lambda i: (i, 0)),   # packed x tile
                pl.BlockSpec((lanes, lanes), lambda i: (0, 0)),    # block-diag W1a*scale
                pl.BlockSpec((kcols, lanes), lambda i: (0, 0)),    # block-diag per-seg vectors
                pl.BlockSpec((1, kcols), lambda i: (0, 0)),        # seg starts (replicated)
                pl.BlockSpec((1, kcols), lambda i: (0, 0)),        # seg ends   (replicated)
            ],
            out_specs=pl.BlockSpec((tile_m, lanes), lambda i: (i, 0)),
        ),
        compiler_params=pltpu.CompilerParams(
            dimension_semantics=("parallel",),       # independent row tiles (megacore)
            vmem_limit_bytes=32 * 1024 * 1024),
    )(xp, wbig, vbig, starts_rep, ends_rep)

    return out_p.reshape(n_pad, C)[:N]


# ---------------- pure-JAX reference (mirrors the PyTorch forward) ----------------

def reference(x, o_list, params, eps=1e-5):
    segs = []
    s = 0
    for e in o_list:
        xb = x[s:e]
        cnt = max(e - s, 1)
        mean = xb.sum(0, keepdims=True) / cnt
        g = jnp.maximum(mean @ params["w2"].T + params["b2"], 0.0)      # linear2 + ReLU
        segs.append(jnp.concatenate([xb, jnp.tile(g, (xb.shape[0], 1))], axis=1))
        s = e
    xc = jnp.concatenate(segs, axis=0)
    h = xc @ params["w1"].T + params["b1"]                               # linear1
    h = (h - params["rmean"]) / jnp.sqrt(params["rvar"] + eps) * params["gamma"] \
        + params["beta"]                                                 # BN (eval)
    return jnp.maximum(h, 0.0)                                           # ReLU


# ---------------- main ----------------

if __name__ == "__main__":
    C = 16                       # in_planes
    N = 600                      # total points (not a multiple of the tile -> padding path)
    o_list = [150, 230, 420, 600]   # cumulative segment offsets (B = 4 segments)

    key = jax.random.PRNGKey(0)
    ks = jax.random.split(key, 9)
    params = {
        "w1":    0.1 * jax.random.normal(ks[0], (C, 2 * C), jnp.float32),
        "b1":    0.1 * jax.random.normal(ks[1], (C,), jnp.float32),
        "gamma": 1.0 + 0.1 * jax.random.normal(ks[2], (C,), jnp.float32),
        "beta":  0.1 * jax.random.normal(ks[3], (C,), jnp.float32),
        "rmean": 0.1 * jax.random.normal(ks[4], (C,), jnp.float32),
        "rvar":  1.0 + 0.1 * jnp.abs(jax.random.normal(ks[5], (C,), jnp.float32)),
        "w2":    0.1 * jax.random.normal(ks[6], (C, C), jnp.float32),
        "b2":    0.1 * jax.random.normal(ks[7], (C,), jnp.float32),
    }
    x = jax.random.normal(ks[8], (N, C), jnp.float32)
    o = jnp.array(o_list, dtype=jnp.int32)

    y_ref = reference(x, o_list, params)

    # f32 operands with a small tile: exercises multi-step accumulation, padding
    # and the segment-boundary masking across tiles.
    y32 = jax.block_until_ready(
        transition_up(x, o, params, tile_n=256, compute_dtype=jnp.float32))
    assert y32.shape == (N, C)
    assert jnp.allclose(y32, y_ref, atol=1e-4, rtol=1e-4), "f32 mismatch vs reference"

    # bf16 matmul operands (v6e/v7x feedback) with f32 accumulation + f32 epilogue.
    ybf = jax.block_until_ready(
        transition_up(x, o, params, compute_dtype=jnp.bfloat16))
    assert ybf.shape == (N, C)
    assert jnp.allclose(ybf, y_ref, atol=5e-2, rtol=5e-2), "bf16 mismatch vs reference"

    print("KERNEL_OK")
</pallas_src>

<mosaic_0001>
module attributes {stable_mosaic.version = 11 : i64} {
  func.func @_seg_global_kernel(%arg0: i32, %arg1: memref<8x1xi32, #tpu.memory_space<vmem>>, %arg2: memref<8x1xi32, #tpu.memory_space<vmem>>, %arg3: memref<8x1xf32, #tpu.memory_space<vmem>>, %arg4: memref<256x16xf32, #tpu.memory_space<vmem>>, %arg5: memref<16x16xf32, #tpu.memory_space<vmem>>, %arg6: memref<1x16xf32, #tpu.memory_space<vmem>>, %arg7: memref<8x16xf32, #tpu.memory_space<vmem>>, %arg8: memref<8x16xf32, #tpu.memory_space<vmem>>) attributes {dimension_semantics = [#tpu.dimension_semantics<arbitrary>], iteration_bounds = array<i64: 3>, scalar_prefetch = 0 : i64, scratch_operands = 1 : i64, tpu.core_type = #tpu.core_type<tc>, window_params = [{pipeline_mode = #tpu.pipeline_mode<synchronous>, transform_indices = @transform_0, window_bounds = array<i64: 8, 1>}, {pipeline_mode = #tpu.pipeline_mode<synchronous>, transform_indices = @transform_1, window_bounds = array<i64: 8, 1>}, {pipeline_mode = #tpu.pipeline_mode<synchronous>, transform_indices = @transform_2, window_bounds = array<i64: 8, 1>}, {transform_indices = @transform_3, window_bounds = array<i64: 256, 16>}, {pipeline_mode = #tpu.pipeline_mode<synchronous>, transform_indices = @transform_4, window_bounds = array<i64: 16, 16>}, {pipeline_mode = #tpu.pipeline_mode<synchronous>, transform_indices = @transform_5, window_bounds = array<i64: 1, 16>}, {pipeline_mode = #tpu.pipeline_mode<synchronous>, transform_indices = @transform_6, window_bounds = array<i64: 8, 16>}]} {
    %c0_i32 = arith.constant 0 : i32
    %0 = arith.cmpi eq, %arg0, %c0_i32 : i32
    %1 = arith.extui %0 : i1 to i32
    %c0_i32_0 = arith.constant 0 : i32
    %2 = arith.cmpi ne, %1, %c0_i32_0 : i32
    scf.if %2 {
      %cst_11 = arith.constant 0.000000e+00 : f32
      %24 = vector.broadcast %cst_11 : f32 to vector<8x16xf32>
      %c0_12 = arith.constant 0 : index
      %c0_13 = arith.constant 0 : index
      %25 = vector.load %arg8[%c0_12, %c0_13] : memref<8x16xf32, #tpu.memory_space<vmem>>, vector<8x16xf32>
      tpu.vector_store %arg8[%c0_12, %c0_13], %24 {strides = array<i32>} : memref<8x16xf32, #tpu.memory_space<vmem>>, vector<8x16xf32>,
    } else {
    }
    %c256_i32 = arith.constant 256 : i32
    %3 = arith.muli %arg0, %c256_i32 : i32
    %4 = tpu.iota {dimensions = array<i32: 1>} : vector<8x256xi32>
    %5 = vector.broadcast %3 : i32 to vector<8x256xi32>
    %6 = arith.addi %5, %4 : vector<8x256xi32>
    %c0 = arith.constant 0 : index
    %c0_1 = arith.constant 0 : index
    %7 = vector.load %arg1[%c0, %c0_1] : memref<8x1xi32, #tpu.memory_space<vmem>>, vector<8x1xi32>
    %8 = vector.broadcast %7 : vector<8x1xi32> to vector<8x256xi32>
    %9 = arith.cmpi sge, %6, %8 : vector<8x256xi32>
    %c0_2 = arith.constant 0 : index
    %c0_3 = arith.constant 0 : index
    %10 = vector.load %arg2[%c0_2, %c0_3] : memref<8x1xi32, #tpu.memory_space<vmem>>, vector<8x1xi32>
    %11 = vector.broadcast %10 : vector<8x1xi32> to vector<8x256xi32>
    %12 = arith.cmpi slt, %6, %11 : vector<8x256xi32>
    %13 = arith.andi %9, %12 : vector<8x256xi1>
    %14 = arith.extui %13 : vector<8x256xi1> to vector<8x256xi32>
    %15 = arith.sitofp %14 : vector<8x256xi32> to vector<8x256xf32>
    %c0_4 = arith.constant 0 : index
    %c0_5 = arith.constant 0 : index
    %16 = vector.load %arg8[%c0_4, %c0_5] : memref<8x16xf32, #tpu.memory_space<vmem>>, vector<8x16xf32>
    %c0_6 = arith.constant 0 : index
    %c0_7 = arith.constant 0 : index
    %17 = vector.load %arg4[%c0_6, %c0_7] : memref<256x16xf32, #tpu.memory_space<vmem>>, vector<256x16xf32>
    %cst = arith.constant dense<0.000000e+00> : vector<8x16xf32>
    %18 = tpu.matmul %15, %17, %cst {dimension_numbers = #tpu.dot_dimension_numbers<[1], [0], [0], [1], [0, 0, 1, 1], [], []>} : vector<8x256xf32>, vector<256x16xf32>, vector<8x16xf32> -> vector<8x16xf32>
    %19 = arith.addf %16, %18 : vector<8x16xf32>
    %c0_8 = arith.constant 0 : index
    %c0_9 = arith.constant 0 : index
    %20 = vector.load %arg8[%c0_8, %c0_9] : memref<8x16xf32, #tpu.memory_space<vmem>>, vector<8x16xf32>
    tpu.vector_store %arg8[%c0_8, %c0_9], %19 {strides = array<i32>} : memref<8x16xf32, #tpu.memory_space<vmem>>, vector<8x16xf32>,
    %c2_i32 = arith.constant 2 : i32
    %21 = arith.cmpi eq, %arg0, %c2_i32 : i32
    %22 = arith.extui %21 : i1 to i32
    %c0_i32_10 = arith.constant 0 : i32
    %23 = arith.cmpi ne, %22, %c0_i32_10 : i32
    scf.if %23 {
      %c0_11 = arith.constant 0 : index
      %c0_12 = arith.constant 0 : index
      %24 = vector.load %arg8[%c0_11, %c0_12] : memref<8x16xf32, #tpu.memory_space<vmem>>, vector<8x16xf32>
      %c0_13 = arith.constant 0 : index
      %c0_14 = arith.constant 0 : index
      %25 = vector.load %arg3[%c0_13, %c0_14] : memref<8x1xf32, #tpu.memory_space<vmem>>, vector<8x1xf32>
      %26 = vector.broadcast %25 : vector<8x1xf32> to vector<8x16xf32>
      %27 = arith.mulf %24, %26 : vector<8x16xf32>
      %c0_15 = arith.constant 0 : index
      %c0_16 = arith.constant 0 : index
      %28 = vector.load %arg5[%c0_15, %c0_16] : memref<16x16xf32, #tpu.memory_space<vmem>>, vector<16x16xf32>
      %cst_17 = arith.constant dense<0.000000e+00> : vector<8x16xf32>
      %29 = tpu.matmul %27, %28, %cst_17 {dimension_numbers = #tpu.dot_dimension_numbers<[1], [0], [0], [1], [0, 0, 1, 1], [], []>} : vector<8x16xf32>, vector<16x16xf32>, vector<8x16xf32> -> vector<8x16xf32>
      %c0_18 = arith.constant 0 : index
      %c0_19 = arith.constant 0 : index
      %30 = vector.load %arg6[%c0_18, %c0_19] : memref<1x16xf32, #tpu.memory_space<vmem>>, vector<1x16xf32>
      %31 = vector.broadcast %30 : vector<1x16xf32> to vector<8x16xf32>
      %32 = arith.addf %29, %31 : vector<8x16xf32>
      %cst_20 = arith.constant 0.000000e+00 : f32
      %33 = vector.broadcast %cst_20 : f32 to vector<8x16xf32>
      %34 = arith.maximumf %32, %33 : vector<8x16xf32>
      %c0_21 = arith.constant 0 : index
      %c0_22 = arith.constant 0 : index
      %35 = vector.load %arg7[%c0_21, %c0_22] : memref<8x16xf32, #tpu.memory_space<vmem>>, vector<8x16xf32>
      tpu.vector_store %arg7[%c0_21, %c0_22], %34 {strides = array<i32>} : memref<8x16xf32, #tpu.memory_space<vmem>>, vector<8x16xf32>,
    } else {
    }
    return
  }
  func.func @transform_0(%arg0: i32) -> (i32, i32) {
    %c0_i32 = arith.constant 0 : i32
    %c0_i32_0 = arith.constant 0 : i32
    %c0_i32_1 = arith.constant 0 : i32
    return %c0_i32, %c0_i32_0 : i32, i32
  }
  func.func @transform_1(%arg0: i32) -> (i32, i32) {
    %c0_i32 = arith.constant 0 : i32
    %c0_i32_0 = arith.constant 0 : i32
    %c0_i32_1 = arith.constant 0 : i32
    return %c0_i32, %c0_i32_0 : i32, i32
  }
  func.func @transform_2(%arg0: i32) -> (i32, i32) {
    %c0_i32 = arith.constant 0 : i32
    %c0_i32_0 = arith.constant 0 : i32
    %c0_i32_1 = arith.constant 0 : i32
    return %c0_i32, %c0_i32_0 : i32, i32
  }
  func.func @transform_3(%arg0: i32) -> (i32, i32) {
    %c0_i32 = arith.constant 0 : i32
    %c0_i32_0 = arith.constant 0 : i32
    return %arg0, %c0_i32 : i32, i32
  }
  func.func @transform_4(%arg0: i32) -> (i32, i32) {
    %c0_i32 = arith.constant 0 : i32
    %c0_i32_0 = arith.constant 0 : i32
    %c0_i32_1 = arith.constant 0 : i32
    return %c0_i32, %c0_i32_0 : i32, i32
  }
  func.func @transform_5(%arg0: i32) -> (i32, i32) {
    %c0_i32 = arith.constant 0 : i32
    %c0_i32_0 = arith.constant 0 : i32
    %c0_i32_1 = arith.constant 0 : i32
    return %c0_i32, %c0_i32_0 : i32, i32
  }
  func.func @transform_6(%arg0: i32) -> (i32, i32) {
    %c0_i32 = arith.constant 0 : i32
    %c0_i32_0 = arith.constant 0 : i32
    %c0_i32_1 = arith.constant 0 : i32
    return %c0_i32, %c0_i32_0 : i32, i32
  }
}

</mosaic_0001>

<llo_original>
// kernel: tpu_custom_call.1
$region0: #{tpu_custom_call.1}
  #allocation0 [shape = 'u32[]', space=smem, size = 0x4, offset = 0x4, fixed_abs, tag = 'smem constant byte address 0x4 - core index']
  #allocation1 [shape = 'u32[72,128]{1,0:T(1,128)}', space=vmem, size = 0x9000, scoped, tag = 'internal scratch']
  #allocation2 [shape = 'f32[8,16]{1,0:T(8,128)}', space=vmem, size = 0x1000, scoped, tag = 'scratch operand']
  %s0 = inlined_call_operand.vmem [shape: s32[8,1], index: 0, kind: input, shape index: {}]
  %s1 = inlined_call_operand.vmem [shape: s32[8,1], index: 1, kind: input, shape index: {}]
  %s2 = inlined_call_operand.vmem [shape: f32[8,1], index: 2, kind: input, shape index: {}]
  %s3 = inlined_call_operand.vmem [shape: f32[768,16], index: 3, kind: input, shape index: {}]
  %s4 = inlined_call_operand.vmem [shape: f32[16,16], index: 4, kind: input, shape index: {}]
  %s5 = inlined_call_operand.vmem [shape: f32[1,16], index: 5, kind: input, shape index: {}]
  %s6 = inlined_call_operand.hbm [shape: f32[8,16], index: 6, kind: output, shape index: {}]
  %s7 = sld [smem:[#allocation0]]
  $region65: #{tpu_custom_call.1} parent=0
    _
  %s9 = ssub.s32 1, %s7
  %s10 = scalar_select 0, %s9, %s7
  $region1: #{tpu_custom_call.1} parent=0
    #allocation3 [shape = 'u8[4096]{0}', space=vmem, size = 0x1000, scoped, tag = 'output window, operand 0, single buffered']
    #allocation4 [shape = 's32[2]{0}', space=sflag, size = 0x8, scoped, tag = 'scoped memory for tpu_custom_call.1']
    %11 = vsyncpa [#allocation4], 0
    loop: start=0, step=1, limit=5
    $region2: #{tpu_custom_call.1} parent=1 // loop_pre_header
      _
    $region3: #{tpu_custom_call.1} parent=1 // loop_header
      %s13 = sphi 0, %s17
      %p14 = scmp.ge.s32.totalorder %s13, 5
      %s21 = sphi 0, %s21
      %s23 = sphi 0, %s21
      %s24 = sphi 0, %s23
      %s38 = sphi 0, %s24
      %s42 = sphi 0, %s42
      %s44 = sphi 0, %s42
      %s45 = sphi 0, %s44
      %s59 = sphi 0, %s45
      %s63 = sphi 0, %s63
      %s65 = sphi 0, %s63
      %s66 = sphi 0, %s65
      %s80 = sphi 0, %s66
      %s86 = sphi 0, %s88
      %s89 = sphi 0, %s86
      %s90 = sphi 0, %s89
      %s106 = sphi 0, %s90
      %s110 = sphi 0, %s110
      %s112 = sphi 0, %s110
      %s113 = sphi 0, %s112
      %s127 = sphi 0, %s113
      %s131 = sphi 0, %s131
      %s133 = sphi 0, %s131
      %s134 = sphi 0, %s133
      %s148 = sphi 0, %s134
      %s152 = sphi 0, %s152
      %s154 = sphi 0, %s152
      %s155 = sphi 0, %s154
      %s169 = sphi 0, %s155
    $region4: #{tpu_custom_call.1} parent=1 // loop_header_branch
      %16 = sbr.rel (%p14) target = $region8
    $region5: #{tpu_custom_call.1} parent=1 // loop_body
      %s18 = ssub.s32 %s13, 1
      %s19 = ssub.s32 %s13, 2
      %s20 = sadd.s32 %s13, 1
      %s22 = sadd.s32 %s21, 1
      %p25 = scmp.eq.s32.totalorder %s13, 2
      %p26 = scmp.ne.s32.totalorder %s21, %s23
      %p27 = scmp.eq.s32.totalorder %s13, 0
      %p28 = por %p26, %p27
      %p29 = scmp.ne.s32.totalorder %s21, %s23
      %p30 = scmp.eq.s32.totalorder %s18, 2
      %p31 = por %p29, %p30
      %p32 = scmp.ne.s32.totalorder %s23, %s24
      %p33 = scmp.eq.s32.totalorder %s18, 0
      %p34 = por %p32, %p33
      %p35 = scmp.ne.s32.totalorder %s23, %s24
      %p36 = scmp.eq.s32.totalorder %s19, 2
      %p37 = por %p35, %p36
      %p39 = scmp.ne.s32.totalorder %s24, %s38
      %p40 = scmp.eq.s32.totalorder %s19, 0
      %p41 = por %p39, %p40
      %s43 = sadd.s32 %s42, 1
      %p46 = scmp.eq.s32.totalorder %s13, 2
      %p47 = scmp.ne.s32.totalorder %s42, %s44
      %p48 = scmp.eq.s32.totalorder %s13, 0
      %p49 = por %p47, %p48
      %p50 = scmp.ne.s32.totalorder %s42, %s44
      %p51 = scmp.eq.s32.totalorder %s18, 2
      %p52 = por %p50, %p51
      %p53 = scmp.ne.s32.totalorder %s44, %s45
      %p54 = scmp.eq.s32.totalorder %s18, 0
      %p55 = por %p53, %p54
      %p56 = scmp.ne.s32.totalorder %s44, %s45
      %p57 = scmp.eq.s32.totalorder %s19, 2
      %p58 = por %p56, %p57
      %p60 = scmp.ne.s32.totalorder %s45, %s59
      %p61 = scmp.eq.s32.totalorder %s19, 0
      %p62 = por %p60, %p61
      %s64 = sadd.s32 %s63, 1
      %p67 = scmp.eq.s32.totalorder %s13, 2
      %p68 = scmp.ne.s32.totalorder %s63, %s65
      %p69 = scmp.eq.s32.totalorder %s13, 0
      %p70 = por %p68, %p69
      %p71 = scmp.ne.s32.totalorder %s63, %s65
      %p72 = scmp.eq.s32.totalorder %s18, 2
      %p73 = por %p71, %p72
      %p74 = scmp.ne.s32.totalorder %s65, %s66
      %p75 = scmp.eq.s32.totalorder %s18, 0
      %p76 = por %p74, %p75
      %p77 = scmp.ne.s32.totalorder %s65, %s66
      %p78 = scmp.eq.s32.totalorder %s19, 2
      %p79 = por %p77, %p78
      %p81 = scmp.ne.s32.totalorder %s66, %s80
      %p82 = scmp.eq.s32.totalorder %s19, 0
      %p83 = por %p81, %p82
      %s84 = ssub.s32 %s13, %s20
      %p85 = scmp.eq.s32.totalorder %s84, 0
      %s87 = sadd.s32 %s86, 1
      %s88 = scalar_select %p85, %s86, %s87
      %p91 = pneg %p85
      %p92 = scmp.eq.s32.totalorder %s13, 2
      %p93 = por %p91, %p92
      %p94 = scmp.ne.s32.totalorder %s86, %s89
      %p95 = scmp.eq.s32.totalorder %s13, 0
      %p96 = por %p94, %p95
      %p97 = scmp.ne.s32.totalorder %s86, %s89
      %p98 = scmp.eq.s32.totalorder %s18, 2
      %p99 = por %p97, %p98
      %p100 = scmp.ne.s32.totalorder %s89, %s90
      %p101 = scmp.eq.s32.totalorder %s18, 0
      %p102 = por %p100, %p101
      %p103 = scmp.ne.s32.totalorder %s89, %s90
      %p104 = scmp.eq.s32.totalorder %s19, 2
      %p105 = por %p103, %p104
      %p107 = scmp.ne.s32.totalorder %s90, %s106
      %p108 = scmp.eq.s32.totalorder %s19, 0
      %p109 = por %p107, %p108
      %s111 = sadd.s32 %s110, 1
      %p114 = scmp.eq.s32.totalorder %s13, 2
      %p115 = scmp.ne.s32.totalorder %s110, %s112
      %p116 = scmp.eq.s32.totalorder %s13, 0
      %p117 = por %p115, %p116
      %p118 = scmp.ne.s32.totalorder %s110, %s112
      %p119 = scmp.eq.s32.totalorder %s18, 2
      %p120 = por %p118, %p119
      %p121 = scmp.ne.s32.totalorder %s112, %s113
      %p122 = scmp.eq.s32.totalorder %s18, 0
      %p123 = por %p121, %p122
      %p124 = scmp.ne.s32.totalorder %s112, %s113
      %p125 = scmp.eq.s32.totalorder %s19, 2
      %p126 = por %p124, %p125
      %p128 = scmp.ne.s32.totalorder %s113, %s127
      %p129 = scmp.eq.s32.totalorder %s19, 0
      %p130 = por %p128, %p129
      %s132 = sadd.s32 %s131, 1
      %p135 = scmp.eq.s32.totalorder %s13, 2
      %p136 = scmp.ne.s32.totalorder %s131, %s133
      %p137 = scmp.eq.s32.totalorder %s13, 0
      %p138 = por %p136, %p137
      %p139 = scmp.ne.s32.totalorder %s131, %s133
      %p140 = scmp.eq.s32.totalorder %s18, 2
      %p141 = por %p139, %p140
      %p142 = scmp.ne.s32.totalorder %s133, %s134
      %p143 = scmp.eq.s32.totalorder %s18, 0
      %p144 = por %p142, %p143
      %p145 = scmp.ne.s32.totalorder %s133, %s134
      %p146 = scmp.eq.s32.totalorder %s19, 2
      %p147 = por %p145, %p146
      %p149 = scmp.ne.s32.totalorder %s134, %s148
      %p150 = scmp.eq.s32.totalorder %s19, 0
      %p151 = por %p149, %p150
      %s153 = sadd.s32 %s152, 1
      %p156 = scmp.eq.s32.totalorder %s13, 2
      %p157 = scmp.ne.s32.totalorder %s152, %s154
      %p158 = scmp.eq.s32.totalorder %s13, 0
      %p159 = por %p157, %p158
      %p160 = scmp.ne.s32.totalorder %s152, %s154
      %p161 = scmp.eq.s32.totalorder %s18, 2
      %p162 = por %p160, %p161
      %p163 = scmp.ne.s32.totalorder %s154, %s155
      %p164 = scmp.eq.s32.totalorder %s18, 0
      %p165 = por %p163, %p164
      %p166 = scmp.ne.s32.totalorder %s154, %s155
      %p167 = scmp.eq.s32.totalorder %s19, 2
      %p168 = por %p166, %p167
      %p170 = scmp.ne.s32.totalorder %s155, %s169
      %p171 = scmp.eq.s32.totalorder %s19, 0
      %p172 = por %p170, %p171
      %p173 = scmp.le.s32.totalorder 1, %s13
      %p174 = scmp.lt.s32.totalorder %s13, 4
      %p175 = pnand %p173, %p174
      %p176 = pneg %p175
      // Predicated region
      $region9: #{tpu_custom_call.1} parent=5 // pred_check
        _
      $region10: #{tpu_custom_call.1} parent=5 // pred_check_branch
        %178 = sbr.rel (%p175) target = $region12
      $region11: #{tpu_custom_call.1} parent=5 // pred_region
        %s179 = ssub.s32 %s13, 1
        // Predicated region
        $region13: #{tpu_custom_call.1} parent=11 // pred_check
          %p180 = pneg %p34
        $region14: #{tpu_custom_call.1} parent=11 // pred_check_branch
          %182 = sbr.rel (%p180) target = $region16
        $region15: #{tpu_custom_call.1} parent=11 // pred_region
          _
        $region16: #{tpu_custom_call.1} parent=11 // pred_fallthru
          _
        // Predicated region
        $region17: #{tpu_custom_call.1} parent=11 // pred_check
          %p183 = pneg %p55
        $region18: #{tpu_custom_call.1} parent=11 // pred_check_branch
          %185 = sbr.rel (%p183) target = $region20
        $region19: #{tpu_custom_call.1} parent=11 // pred_region
          _
        $region20: #{tpu_custom_call.1} parent=11 // pred_fallthru
          _
        // Predicated region
        $region21: #{tpu_custom_call.1} parent=11 // pred_check
          %p186 = pneg %p76
        $region22: #{tpu_custom_call.1} parent=11 // pred_check_branch
          %188 = sbr.rel (%p186) target = $region24
        $region23: #{tpu_custom_call.1} parent=11 // pred_region
          _
        $region24: #{tpu_custom_call.1} parent=11 // pred_fallthru
          _
        // Predicated region
        $region25: #{tpu_custom_call.1} parent=11 // pred_check
          %p189 = pneg %p123
        $region26: #{tpu_custom_call.1} parent=11 // pred_check_branch
          %191 = sbr.rel (%p189) target = $region28
        $region27: #{tpu_custom_call.1} parent=11 // pred_region
          _
        $region28: #{tpu_custom_call.1} parent=11 // pred_fallthru
          _
        // Predicated region
        $region29: #{tpu_custom_call.1} parent=11 // pred_check
          %p192 = pneg %p144
        $region30: #{tpu_custom_call.1} parent=11 // pred_check_branch
          %194 = sbr.rel (%p192) target = $region32
        $region31: #{tpu_custom_call.1} parent=11 // pred_region
          _
        $region32: #{tpu_custom_call.1} parent=11 // pred_fallthru
          _
      $region12: #{tpu_custom_call.1} parent=5 // pred_fallthru
        _
      %p195 = scmp.lt.s32.totalorder %s13, 3
      // Predicated region
      $region33: #{tpu_custom_call.1} parent=5 // pred_check
        %p196 = pneg %p195
      $region34: #{tpu_custom_call.1} parent=5 // pred_check_branch
        %198 = sbr.rel (%p196) target = $region36
      $region35: #{tpu_custom_call.1} parent=5 // pred_region
        // Predicated region
        $region37: #{tpu_custom_call.1} parent=35 // pred_check
          %p199 = pneg %p96
        $region38: #{tpu_custom_call.1} parent=35 // pred_check_branch
          %201 = sbr.rel (%p199) target = $region40
        $region39: #{tpu_custom_call.1} parent=35 // pred_region
          %s202 = smul.u32 32, %s13
          %p203 = scmp.lt.s32.totalorder %s202, 95
          %s204 = scalar_select %p203, %s202, 95
          %s205 = smul.addr %s204, 8
          %s206 = scalar_lea.vmem %s3, %s205
          %s207 = smul.u32 32, %s13
        $region40: #{tpu_custom_call.1} parent=35 // pred_fallthru
          _
      $region36: #{tpu_custom_call.1} parent=5 // pred_fallthru
        _
      %p208 = scmp.le.s32.totalorder 1, %s13
      %p209 = scmp.lt.s32.totalorder %s13, 4
      %p210 = pnand %p208, %p209
      %p211 = pneg %p210
      // Predicated region
      $region41: #{tpu_custom_call.1} parent=5 // pred_check
        _
      $region42: #{tpu_custom_call.1} parent=5 // pred_check_branch
        %213 = sbr.rel (%p210) target = $region44
      $region43: #{tpu_custom_call.1} parent=5 // pred_region
        %s214 = ssub.s32 %s13, 1
        %p215 = pneg %p34
        %p216 = pneg %p31
        %p217 = pneg %p55
        %p218 = pneg %p52
        %p219 = pneg %p76
        %p220 = pneg %p73
        %s221 = smul.u32 32, %s18
        %p222 = scmp.lt.s32.totalorder %s221, 95
        %s223 = scalar_select %p222, %s221, 95
        %s224 = smul.addr %s223, 8
        %s225 = scalar_lea.vmem %s3, %s224
        %p226 = pneg %p102
        %p227 = pneg %p99
        %p228 = pneg %p123
        %p229 = pneg %p120
        %p230 = pneg %p144
        %p231 = pneg %p141
        %p232 = pneg %p165
        %p233 = pneg %p162
        %s234 = smul.u32 32, %s18
        %p235 = scmp.lt.s32.totalorder %s234, 95
        %s236 = scalar_select %p235, %s234, 95
        %s237 = smul.addr %s236, 8
        %s238 = scalar_lea.vmem %s3, %s237
        %s239 = smul.u32 32, %s18
        %p240 = scmp.eq.s32.totalorder %s18, 0
        // Predicated region
        $region45: #{tpu_custom_call.1} parent=43 // pred_check
          %p241 = pneg %p240
        $region46: #{tpu_custom_call.1} parent=43 // pred_check_branch
          %243 = sbr.rel (%p241) target = $region48
        $region47: #{tpu_custom_call.1} parent=43 // pred_region
          %vm244 = vcmask 130048
          %245 = vst.msk [vmem:[#allocation2] sm:$0xff] %vm244, 0.0
        $region48: #{tpu_custom_call.1} parent=43 // pred_fallthru
          _
        %s246 = smul.u32 %s18, 256
        %v247 = vlaneseq
        %v248 = vand.u32 %v247, 127
        %v249 = vadd.s32 %v248, 128
        %v250 = vstv %s246
        %v251 = vadd.s32 %v250, %v248
        %v252 = vadd.s32 %v250, %v249
        %v253 = vld [vmem:[%s0] sm:$0xff]
        %254 = vset.pattern.permute.xlu0 0
        %255 = vperm.xlu0 %254, %v253
        %v256 = vpop.permute.xlu0 %255
        %vm257 = vcmp.ge.s32.totalorder %v251, %v256
        %vm258 = vcmp.ge.s32.totalorder %v252, %v256
        %v259 = vld [vmem:[%s1] sm:$0xff]
        %260 = vset.pattern.permute.xlu0 0
        %261 = vperm.xlu0 %260, %v259
        %v262 = vpop.permute.xlu0 %261
        %vm263 = vcmp.lt.s32.totalorder %v251, %v262
        %vm264 = vcmp.lt.s32.totalorder %v252, %v262
        %vm265 = vmand %vm257, %vm263
        %vm266 = vmand %vm258, %vm264
        %v267 = vsel %vm265, 1, 0
        %v268 = vsel %vm266, 1, 0
        %v269 = vcvt.s32.f32 %v267
        %v270 = vcvt.s32.f32 %v268
        %v271 = vld [vmem:[#allocation2] sm:$0xff]
        %v272 = vld [vmem:[%s238] sm:$0xff]
        %v273 = vld [vmem:[%s238 + $0x8] sm:$0xff]
        %v274 = vld [vmem:[%s238 + $0x10] sm:$0xff]
        %v275 = vld [vmem:[%s238 + $0x18] sm:$0xff]
        %v276 = vld [vmem:[%s238 + $0x20] sm:$0xff]
        %v277 = vld [vmem:[%s238 + $0x28] sm:$0xff]
        %v278 = vld [vmem:[%s238 + $0x30] sm:$0xff]
        %v279 = vld [vmem:[%s238 + $0x38] sm:$0xff]
        %v280 = vld [vmem:[%s238 + $0x40] sm:$0xff]
        %v281 = vld [vmem:[%s238 + $0x48] sm:$0xff]
        %v282 = vld [vmem:[%s238 + $0x50] sm:$0xff]
        %v283 = vld [vmem:[%s238 + $0x58] sm:$0xff]
        %v284 = vld [vmem:[%s238 + $0x60] sm:$0xff]
        %v285 = vld [vmem:[%s238 + $0x68] sm:$0xff]
        %v286 = vld [vmem:[%s238 + $0x70] sm:$0xff]
        %v287 = vld [vmem:[%s238 + $0x78] sm:$0xff]
        %v288 = vld [vmem:[%s238 + $0x80] sm:$0xff]
        %v289 = vld [vmem:[%s238 + $0x88] sm:$0xff]
        %v290 = vld [vmem:[%s238 + $0x90] sm:$0xff]
        %v291 = vld [vmem:[%s238 + $0x98] sm:$0xff]
        %v292 = vld [vmem:[%s238 + $0xa0] sm:$0xff]
        %v293 = vld [vmem:[%s238 + $0xa8] sm:$0xff]
        %v294 = vld [vmem:[%s238 + $0xb0] sm:$0xff]
        %v295 = vld [vmem:[%s238 + $0xb8] sm:$0xff]
        %v296 = vld [vmem:[%s238 + $0xc0] sm:$0xff]
        %v297 = vld [vmem:[%s238 + $0xc8] sm:$0xff]
        %v298 = vld [vmem:[%s238 + $0xd0] sm:$0xff]
        %v299 = vld [vmem:[%s238 + $0xd8] sm:$0xff]
        %v300 = vld [vmem:[%s238 + $0xe0] sm:$0xff]
        %v301 = vld [vmem:[%s238 + $0xe8] sm:$0xff]
        %v302 = vld [vmem:[%s238 + $0xf0] sm:$0xff]
        %v303 = vld [vmem:[%s238 + $0xf8] sm:$0xff]
        %304 = vmatpush.msra.mxu0 %v287
        %305 = vmatpush.msra.mxu0 %v286
        %306 = vmatpush.msra.mxu0 %v285
        %307 = vmatpush.msra.mxu0 %v284
        %308 = vmatpush.msra.mxu0 %v283
        %309 = vmatpush.msra.mxu0 %v282
        %310 = vmatpush.msra.mxu0 %v281
        %311 = vmatpush.msra.mxu0 %v280
        %312 = vmatpush.msra.mxu0 %v279
        %313 = vmatpush.msra.mxu0 %v278
        %314 = vmatpush.msra.mxu0 %v277
        %315 = vmatpush.msra.mxu0 %v276
        %316 = vmatpush.msra.mxu0 %v275
        %317 = vmatpush.msra.mxu0 %v274
        %318 = vmatpush.msra.mxu0 %v273
        %319 = vmatpush.msra.mxu0 %v272
        %320 = vmatmul.f32.gmra.mxu0 %v269
        %v321 = vpop.f32.mrf.mxu0
        %v322 = vadd.f32 0.0, %v321
        %323 = vdwg.mxu0
        %324 = vmatpush.msra.mxu0 %v303
        %325 = vmatpush.msra.mxu0 %v302
        %326 = vmatpush.msra.mxu0 %v301
        %327 = vmatpush.msra.mxu0 %v300
        %328 = vmatpush.msra.mxu0 %v299
        %329 = vmatpush.msra.mxu0 %v298
        %330 = vmatpush.msra.mxu0 %v297
        %331 = vmatpush.msra.mxu0 %v296
        %332 = vmatpush.msra.mxu0 %v295
        %333 = vmatpush.msra.mxu0 %v294
        %334 = vmatpush.msra.mxu0 %v293
        %335 = vmatpush.msra.mxu0 %v292
        %336 = vmatpush.msra.mxu0 %v291
        %337 = vmatpush.msra.mxu0 %v290
        %338 = vmatpush.msra.mxu0 %v289
        %339 = vmatpush.msra.mxu0 %v288
        %340 = vmatmul.f32.gmra.mxu0 %v270
        %v341 = vpop.f32.mrf.mxu0
        %v342 = vadd.f32 %v322, %v341
        %343 = vdwg.mxu0
        %v344 = vadd.f32 %v271, %v342
        %vm345 = vcmask 130048
        %346 = vst.msk [vmem:[#allocation2] sm:$0xff] %vm345, %v344
        %p347 = scmp.eq.s32.totalorder %s18, 2
        // Predicated region
        $region49: #{tpu_custom_call.1} parent=43 // pred_check
          %p348 = pneg %p347
        $region50: #{tpu_custom_call.1} parent=43 // pred_check_branch
          %350 = sbr.rel (%p348) target = $region52
        $region51: #{tpu_custom_call.1} parent=43 // pred_region
          %v351 = vld [vmem:[#allocation2] sm:$0xff]
          %v352 = vld [vmem:[%s2] sm:$0xff]
          %354 = vset.pattern.permute.xlu0 0
          %355 = vperm.xlu0 %354, %v352
          %v356 = vpop.permute.xlu0 %355
          %v358 = vmul.f32 %v351, %v356
          %v359 = vld [vmem:[%s4] sm:$0xff]
          %v360 = vld [vmem:[%s4 + $0x8] sm:$0xff]
          %v361 = vld [vmem:[%s5] sm:$0x1]
          %v363 = vperm.slane %v361, 0
          %v366 = vsel %vm345, %v358, 0
          %368 = vmatpush.msra.mxu0 0.0
          %369 = vmatpush.msra.mxu0 0.0
          %370 = vmatpush.msra.mxu0 0.0
          %371 = vmatpush.msra.mxu0 0.0
          %372 = vmatpush.msra.mxu0 0.0
          %373 = vmatpush.msra.mxu0 0.0
          %374 = vmatpush.msra.mxu0 0.0
          %375 = vmatpush.msra.mxu0 0.0
          %376 = vmatpush.msra.mxu0 0.0
          %377 = vmatpush.msra.mxu0 0.0
          %378 = vmatpush.msra.mxu0 0.0
          %379 = vmatpush.msra.mxu0 0.0
          %380 = vmatpush.msra.mxu0 0.0
          %381 = vmatpush.msra.mxu0 0.0
          %382 = vmatpush.msra.mxu0 %v360
          %383 = vmatpush.msra.mxu0 %v359
          %384 = vmatmul.f32.gmra.mxu0 %v366
          %v385 = vpop.f32.mrf.mxu0
          %v386 = vadd.f32 %v363, %v385
          %387 = vdwg.mxu0
          %v388 = vmax.f32 %v386, 0.0
          %389 = vst.msk [vmem:[#allocation3] sm:$0xff] %vm345, %v388
        $region52: #{tpu_custom_call.1} parent=43 // pred_fallthru
          _
        // Predicated region
        $region53: #{tpu_custom_call.1} parent=43 // pred_check
          %p390 = pneg %p162
        $region54: #{tpu_custom_call.1} parent=43 // pred_check_branch
          %392 = sbr.rel (%p390) target = $region56
        $region55: #{tpu_custom_call.1} parent=43 // pred_region
          %394 = vsyncadd [#allocation4], 0
          %s396 = sshll.u32 [#allocation3], 4
          %s397 = int_to_ptr.vmem [resolvable:$true] %s396
          %s398 = sshll.u32 %s6, 4
          %s399 = int_to_ptr.hbm [resolvable:$true] %s398
          %401 = dma.vmem_to_hbm [thread:$0]  %s397, 128, %s399, [#allocation4]
        $region56: #{tpu_custom_call.1} parent=43 // pred_fallthru
          _
        // Predicated region
        $region57: #{tpu_custom_call.1} parent=43 // pred_check
          %p402 = pneg %p162
        $region58: #{tpu_custom_call.1} parent=43 // pred_check_branch
          %404 = sbr.rel (%p402) target = $region60
        $region59: #{tpu_custom_call.1} parent=43 // pred_region
          %406 = dma.done [#allocation4], 128
        $region60: #{tpu_custom_call.1} parent=43 // pred_fallthru
          _
      $region44: #{tpu_custom_call.1} parent=5 // pred_fallthru
        _
      %p407 = scmp.le.s32.totalorder 2, %s13
      // Predicated region
      $region61: #{tpu_custom_call.1} parent=5 // pred_check
        %p408 = pneg %p407
      $region62: #{tpu_custom_call.1} parent=5 // pred_check_branch
        %410 = sbr.rel (%p408) target = $region64
      $region63: #{tpu_custom_call.1} parent=5 // pred_region
        %s411 = ssub.s32 %s13, 2
      $region64: #{tpu_custom_call.1} parent=5 // pred_fallthru
        _
    $region6: #{tpu_custom_call.1} parent=1 // loop_footer
      %s17 = sadd.s32 1, %s13
    $region7: #{tpu_custom_call.1} parent=1 // loop_footer_branch
      %12 = sbr.rel target = $region3
    $region8: #{tpu_custom_call.1} parent=1 // loop_exit
      _
    %412 = vsyncpa [#allocation4], 1
    %s413 = scalar_lea.sflag [#allocation4], 1
    %414 = vsyncpa %s413, 1

</llo_original>
